<compile_context>
chip_gen: v7x
topology: tpu7x:2x2x1
jax: 0.10.0
libtpu: 0.0.40
codegen_flags: <defaults>
</compile_context>

<pallas_src>
import jax
import jax.numpy as jnp
from jax import lax
from jax.experimental import pallas as pl
from jax.experimental.pallas import tpu as pltpu


K_OFFSETS = 27   # 3*3*3 submanifold conv taps
K_PADDED = 28    # +1 always-zero tap so K*dim = 28*32 = 896 = 7*128 lanes


# ----------------------------- Pallas kernel ------------------------------- #
def _importance_kernel(g_ref, w_ref, b_ref, gamma_ref, beta_ref, o_ref):
    # g_ref     : (K_PADDED*dim, TM) bf16  transposed im2col block
    #             (contraction on sublanes, voxel rows on lanes)
    # w_ref     : (dim, K_PADDED*dim) bf16 transposed, flattened SubMConv3d weights
    # b_ref, gamma_ref, beta_ref : (dim, 1) f32   per-channel params (sublane axis)
    # o_ref     : (dim, TM) f32            transposed output block
    #
    # out^T = W^T @ G^T : LHS has only 32 rows -> few MXU pushes; output and
    # epilogue are lane-dense.
    x = jnp.dot(w_ref[...], g_ref[...], preferred_element_type=jnp.float32)
    x = x + b_ref[...]                                   # lane-broadcast bias

    # exact GELU (erf formulation, matches torch.nn.GELU() default)
    x = 0.5 * x * (1.0 + lax.erf(x * 0.7071067811865476))

    # LayerNorm over the channel axis (now the sublane axis 0), eps = 1e-5
    mean = jnp.mean(x, axis=0, keepdims=True)            # (1, TM)
    centered = x - mean
    var = jnp.mean(centered * centered, axis=0, keepdims=True)
    xn = centered * lax.rsqrt(var + 1e-5)
    o_ref[...] = (xn * gamma_ref[...] + beta_ref[...]).astype(o_ref.dtype)


def importance3d_pallas(gathered_t, w_t, bias, gamma, beta, *, tm):
    """gathered_t: [K_PADDED*dim, N_pad] bf16 -> returns [dim, N_pad] f32."""
    kd, n_pad = gathered_t.shape
    dim = w_t.shape[0]
    assert n_pad % tm == 0 and tm % 128 == 0 and kd % 128 == 0 and dim % 8 == 0

    grid = (n_pad // tm,)
    # VMEM budget @ tm=2048: g tile 3.5 MiB + out tile 0.25 MiB, double-buffered
    # -> ~7.7 MiB: fits every generation's scoped default, no vmem_limit needed.
    # (A pl.Buffered(3) sweep on in_specs[0] is a possible <5% v5e tweak.)
    return pl.pallas_call(
        _importance_kernel,
        out_shape=jax.ShapeDtypeStruct((dim, n_pad), jnp.float32),
        grid_spec=pltpu.PrefetchScalarGridSpec(
            num_scalar_prefetch=0,
            grid=grid,
            in_specs=[
                pl.BlockSpec((kd, tm), lambda i: (0, i)),      # im2col^T block
                pl.BlockSpec((dim, kd), lambda i: (0, 0)),     # W^T (grid-invariant)
                pl.BlockSpec((dim, 1), lambda i: (0, 0)),      # bias
                pl.BlockSpec((dim, 1), lambda i: (0, 0)),      # gamma
                pl.BlockSpec((dim, 1), lambda i: (0, 0)),      # beta
            ],
            out_specs=pl.BlockSpec((dim, tm), lambda i: (0, i)),
        ),
        compiler_params=pltpu.CompilerParams(
            dimension_semantics=("parallel",)),
    )(gathered_t, w_t, bias, gamma, beta)


# ------------------------ JAX glue (gather / setup) ------------------------- #
def _round_up(x, m):
    return ((x + m - 1) // m) * m


def _choose_row_tile(n, tm_max=2048):
    """Row tile <= tm_max (multiple of 128: rows sit on the lane axis)."""
    num_tiles = -(-n // tm_max)                 # cdiv
    tm = _round_up(-(-n // num_tiles), 128)
    return tm, num_tiles * tm


def build_neighbor_index(coords, spatial, num_voxels):
    """Submanifold 3x3x3 neighbor lookup (spconv rulebook equivalent).

    coords: [N, 4] int32 (batch, z, y, x).  Returns [N, 27] int32 indices into
    a feature table with an extra zero row at position N for missing
    neighbors (implements padding=(1,1,1) + empty-site zeros).
    """
    # TODO(synk): this materializes a dense int32 [B,D,H,W] volume — fine for
    # the demo grid, replace with a hash-based rulebook for realistic grids.
    B, D, H, W = spatial
    n = coords.shape[0]
    dense = -jnp.ones((B, D, H, W), jnp.int32)
    dense = dense.at[coords[:, 0], coords[:, 1], coords[:, 2], coords[:, 3]].set(
        jnp.arange(n, dtype=jnp.int32))

    offs = []
    for dz in (-1, 0, 1):
        for dy in (-1, 0, 1):
            for dx in (-1, 0, 1):
                offs.append((dz, dy, dx))

    nbr_cols = []
    for (dz, dy, dx) in offs:
        nz = coords[:, 1] + dz
        ny = coords[:, 2] + dy
        nx = coords[:, 3] + dx
        valid = ((nz >= 0) & (nz < D) & (ny >= 0) & (ny < H)
                 & (nx >= 0) & (nx < W))
        idx = dense[coords[:, 0],
                    jnp.clip(nz, 0, D - 1),
                    jnp.clip(ny, 0, H - 1),
                    jnp.clip(nx, 0, W - 1)]
        idx = jnp.where(valid & (idx >= 0), idx, num_voxels)  # -> zero row
        nbr_cols.append(idx)
    return jnp.stack(nbr_cols, axis=1)  # [N, 27]


def importance3d_forward(features, coords, spatial, params, *, tm_max=2048):
    """features: [N, dim] f32, coords: [N, 4] int32 (batch, z, y, x)."""
    n, dim = features.shape

    nbr_idx = build_neighbor_index(coords, spatial, n)                # [N, 27]
    # 28th "neighbor" always hits the zero row: pads the contraction dim to
    # 28*dim = 896 (= 7*128 lanes) for free inside the gather.
    nbr_idx = jnp.concatenate(
        [nbr_idx, jnp.full((n, 1), n, jnp.int32)], axis=1)            # [N, 28]

    # Pad the cheap int32 index table (not the 896-wide bf16 im2col) up to the
    # tile-aligned row count; padding rows gather the all-zero feature row.
    tm, n_pad = _choose_row_tile(n, tm_max)
    nbr_idx = jnp.pad(nbr_idx, ((0, n_pad - n), (0, 0)),
                      constant_values=n)                              # [n_pad, 28]

    # Transposed feature table [dim, N+1]; gathering columns with the
    # transposed index [28, n_pad] emits the im2col directly in the
    # [dim, 28, n_pad] -> [896, n_pad] layout the kernel wants — no separate
    # transpose pass over the dominant buffer.  Streamed in bf16.
    feats_pad_t = jnp.concatenate(
        [features, jnp.zeros((1, dim), features.dtype)], axis=0).T    # [dim, N+1]
    feats_pad_t = feats_pad_t.astype(jnp.bfloat16)
    gathered_t = feats_pad_t[:, nbr_idx.T].reshape(dim * K_PADDED, n_pad)

    # Note: weight layout here is weight[k, c_in, c_out]; verify the layout
    # ((kD,kH,kW,in,out) vs (out,in,kD,kH,kW)) before porting real spconv
    # checkpoints into this transpose/reshape.
    w = params["weight"]                                              # [27, dim, dim]
    w = jnp.pad(w, ((0, K_PADDED - K_OFFSETS), (0, 0), (0, 0)))       # [28, dim, dim]
    # W^T[c_out, c_in*28 + k] = weight[k, c_in, c_out]  (matches gather ordering)
    w_t = jnp.transpose(w, (2, 1, 0)).reshape(dim, dim * K_PADDED)
    w_t = w_t.astype(jnp.bfloat16)

    out_t = importance3d_pallas(
        gathered_t, w_t,
        params["bias"].reshape(dim, 1).astype(jnp.float32),
        params["gamma"].reshape(dim, 1).astype(jnp.float32),
        params["beta"].reshape(dim, 1).astype(jnp.float32),
        tm=tm)                                                        # [dim, n_pad]
    return out_t[:, :n].T                                             # [N, dim]


def importance3d_reference(features, coords, spatial, params, *, cast=None):
    """Pure-JAX reference.  cast=jnp.bfloat16 mimics the kernel's bf16 operands."""
    n, dim = features.shape
    nbr_idx = build_neighbor_index(coords, spatial, n)
    f = features
    w = params["weight"].reshape(K_OFFSETS * dim, dim)
    if cast is not None:
        f = f.astype(cast).astype(jnp.float32)
        w = w.astype(cast).astype(jnp.float32)
    feats_pad = jnp.concatenate([f, jnp.zeros((1, dim), f.dtype)], axis=0)
    gathered = feats_pad[nbr_idx].reshape(n, K_OFFSETS * dim)
    x = jnp.dot(gathered, w, precision=lax.Precision.HIGHEST) + params["bias"]
    x = jax.nn.gelu(x, approximate=False)
    mean = jnp.mean(x, axis=-1, keepdims=True)
    var = jnp.mean((x - mean) ** 2, axis=-1, keepdims=True)
    xn = (x - mean) / jnp.sqrt(var + 1e-5)
    return xn * params["gamma"] + params["beta"]


# ---------------------------------- main ------------------------------------ #
if __name__ == "__main__":
    key = jax.random.PRNGKey(0)
    dim = 32          # channel dim of SubMConv3d(dim, dim, 3x3x3)
    B, D, H, W = 2, 8, 8, 8
    N = 100           # number of active voxels

    k_coord, k_feat, k_w, k_b = jax.random.split(key, 4)

    # unique active-voxel coordinates (batch, z, y, x)
    flat = jax.random.choice(k_coord, B * D * H * W, shape=(N,), replace=False)
    flat = jnp.sort(flat).astype(jnp.int32)
    coords = jnp.stack([
        flat // (D * H * W),
        (flat // (H * W)) % D,
        (flat // W) % H,
        flat % W,
    ], axis=1).astype(jnp.int32)

    features = jax.random.normal(k_feat, (N, dim), dtype=jnp.float32)

    params = {
        # weight[k, c_in, c_out] for the 27 kernel taps
        "weight": 0.05 * jax.random.normal(k_w, (27, dim, dim), jnp.float32),
        "bias": 0.02 * jax.random.normal(k_b, (dim,), jnp.float32),
        "gamma": jnp.ones((dim,), jnp.float32),   # nn.LayerNorm defaults
        "beta": jnp.zeros((dim,), jnp.float32),
    }

    fwd = jax.jit(lambda f, c, p: importance3d_forward(f, c, (B, D, H, W), p))
    out = jax.block_until_ready(fwd(features, coords, params))

    ref_f32 = importance3d_reference(features, coords, (B, D, H, W), params)
    ref_bf16 = importance3d_reference(features, coords, (B, D, H, W), params,
                                      cast=jnp.bfloat16)

    assert out.shape == (N, dim)
    # tight check vs a reference with the same bf16-cast matmul operands
    # (f32 accumulation either way; differences are summation-order only)
    assert jnp.max(jnp.abs(out - ref_bf16)) < 2e-3, "mismatch vs bf16 reference"
    # loose check vs the exact f32 module semantics (bf16 operand rounding is a
    # known, intentional numerics delta of the streamed-bf16 kernel)
    assert jnp.max(jnp.abs(out - ref_f32)) < 5e-2, "mismatch vs f32 reference"

    print("KERNEL_OK")
</pallas_src>

<mosaic_0001>
module attributes {stable_mosaic.version = 11 : i64} {
  func.func @_importance_kernel(%arg0: i32, %arg1: memref<896x128xbf16, #tpu.memory_space<vmem>>, %arg2: memref<32x896xbf16, #tpu.memory_space<vmem>>, %arg3: memref<32x1xf32, #tpu.memory_space<vmem>>, %arg4: memref<32x1xf32, #tpu.memory_space<vmem>>, %arg5: memref<32x1xf32, #tpu.memory_space<vmem>>, %arg6: memref<32x128xf32, #tpu.memory_space<vmem>>) attributes {dimension_semantics = [#tpu.dimension_semantics<parallel>], iteration_bounds = array<i64: 1>, scalar_prefetch = 0 : i64, scratch_operands = 0 : i64, tpu.core_type = #tpu.core_type<tc>, window_params = [{transform_indices = @transform_0, window_bounds = array<i64: 896, 128>}, {pipeline_mode = #tpu.pipeline_mode<synchronous>, transform_indices = @transform_1, window_bounds = array<i64: 32, 896>}, {pipeline_mode = #tpu.pipeline_mode<synchronous>, transform_indices = @transform_2, window_bounds = array<i64: 32, 1>}, {pipeline_mode = #tpu.pipeline_mode<synchronous>, transform_indices = @transform_3, window_bounds = array<i64: 32, 1>}, {pipeline_mode = #tpu.pipeline_mode<synchronous>, transform_indices = @transform_4, window_bounds = array<i64: 32, 1>}, {transform_indices = @transform_5, window_bounds = array<i64: 32, 128>}]} {
    %c0 = arith.constant 0 : index
    %c0_0 = arith.constant 0 : index
    %0 = vector.load %arg2[%c0, %c0_0] : memref<32x896xbf16, #tpu.memory_space<vmem>>, vector<32x896xbf16>
    %c0_1 = arith.constant 0 : index
    %c0_2 = arith.constant 0 : index
    %1 = vector.load %arg1[%c0_1, %c0_2] : memref<896x128xbf16, #tpu.memory_space<vmem>>, vector<896x128xbf16>
    %cst = arith.constant dense<0.000000e+00> : vector<32x128xf32>
    %2 = tpu.matmul %0, %1, %cst {dimension_numbers = #tpu.dot_dimension_numbers<[1], [0], [0], [1], [0, 0, 1, 1], [], []>} : vector<32x896xbf16>, vector<896x128xbf16>, vector<32x128xf32> -> vector<32x128xf32>
    %c0_3 = arith.constant 0 : index
    %c0_4 = arith.constant 0 : index
    %3 = vector.load %arg3[%c0_3, %c0_4] : memref<32x1xf32, #tpu.memory_space<vmem>>, vector<32x1xf32>
    %4 = vector.broadcast %3 : vector<32x1xf32> to vector<32x128xf32>
    %5 = arith.addf %2, %4 : vector<32x128xf32>
    %cst_5 = arith.constant 5.000000e-01 : f32
    %6 = vector.broadcast %cst_5 : f32 to vector<32x128xf32>
    %7 = arith.mulf %6, %5 : vector<32x128xf32>
    %cst_6 = arith.constant 0.707106769 : f32
    %8 = vector.broadcast %cst_6 : f32 to vector<32x128xf32>
    %9 = arith.mulf %5, %8 : vector<32x128xf32>
    %10 = math.erf %9 : vector<32x128xf32>
    %cst_7 = arith.constant 1.000000e+00 : f32
    %11 = vector.broadcast %cst_7 : f32 to vector<32x128xf32>
    %12 = arith.addf %11, %10 : vector<32x128xf32>
    %13 = arith.mulf %7, %12 : vector<32x128xf32>
    %cst_8 = arith.constant dense<0.000000e+00> : vector<128xf32>
    %14 = vector.multi_reduction <add>, %13, %cst_8 [0] : vector<32x128xf32> to vector<128xf32>
    %15 = vector.shape_cast %14 : vector<128xf32> to vector<1x128xf32>
    %cst_9 = arith.constant 3.200000e+01 : f32
    %16 = vector.broadcast %cst_9 : f32 to vector<1x128xf32>
    %17 = arith.divf %15, %16 : vector<1x128xf32>
    %18 = vector.broadcast %17 : vector<1x128xf32> to vector<32x128xf32>
    %19 = arith.subf %13, %18 : vector<32x128xf32>
    %20 = arith.mulf %19, %19 : vector<32x128xf32>
    %cst_10 = arith.constant dense<0.000000e+00> : vector<128xf32>
    %21 = vector.multi_reduction <add>, %20, %cst_10 [0] : vector<32x128xf32> to vector<128xf32>
    %22 = vector.shape_cast %21 : vector<128xf32> to vector<1x128xf32>
    %cst_11 = arith.constant 3.200000e+01 : f32
    %23 = vector.broadcast %cst_11 : f32 to vector<1x128xf32>
    %24 = arith.divf %22, %23 : vector<1x128xf32>
    %cst_12 = arith.constant 9.99999974E-6 : f32
    %25 = vector.broadcast %cst_12 : f32 to vector<1x128xf32>
    %26 = arith.addf %24, %25 : vector<1x128xf32>
    %27 = math.rsqrt %26 : vector<1x128xf32>
    %28 = vector.broadcast %27 : vector<1x128xf32> to vector<32x128xf32>
    %29 = arith.mulf %19, %28 : vector<32x128xf32>
    %c0_13 = arith.constant 0 : index
    %c0_14 = arith.constant 0 : index
    %30 = vector.load %arg4[%c0_13, %c0_14] : memref<32x1xf32, #tpu.memory_space<vmem>>, vector<32x1xf32>
    %31 = vector.broadcast %30 : vector<32x1xf32> to vector<32x128xf32>
    %32 = arith.mulf %29, %31 : vector<32x128xf32>
    %c0_15 = arith.constant 0 : index
    %c0_16 = arith.constant 0 : index
    %33 = vector.load %arg5[%c0_15, %c0_16] : memref<32x1xf32, #tpu.memory_space<vmem>>, vector<32x1xf32>
    %34 = vector.broadcast %33 : vector<32x1xf32> to vector<32x128xf32>
    %35 = arith.addf %32, %34 : vector<32x128xf32>
    %c0_17 = arith.constant 0 : index
    %c0_18 = arith.constant 0 : index
    %36 = vector.load %arg6[%c0_17, %c0_18] : memref<32x128xf32, #tpu.memory_space<vmem>>, vector<32x128xf32>
    tpu.vector_store %arg6[%c0_17, %c0_18], %35 {strides = array<i32>} : memref<32x128xf32, #tpu.memory_space<vmem>>, vector<32x128xf32>,
    return
  }
  func.func @transform_0(%arg0: i32) -> (i32, i32) {
    %c0_i32 = arith.constant 0 : i32
    %c0_i32_0 = arith.constant 0 : i32
    return %c0_i32, %arg0 : i32, i32
  }
  func.func @transform_1(%arg0: i32) -> (i32, i32) {
    %c0_i32 = arith.constant 0 : i32
    %c0_i32_0 = arith.constant 0 : i32
    %c0_i32_1 = arith.constant 0 : i32
    return %c0_i32, %c0_i32_0 : i32, i32
  }
  func.func @transform_2(%arg0: i32) -> (i32, i32) {
    %c0_i32 = arith.constant 0 : i32
    %c0_i32_0 = arith.constant 0 : i32
    %c0_i32_1 = arith.constant 0 : i32
    return %c0_i32, %c0_i32_0 : i32, i32
  }
  func.func @transform_3(%arg0: i32) -> (i32, i32) {
    %c0_i32 = arith.constant 0 : i32
    %c0_i32_0 = arith.constant 0 : i32
    %c0_i32_1 = arith.constant 0 : i32
    return %c0_i32, %c0_i32_0 : i32, i32
  }
  func.func @transform_4(%arg0: i32) -> (i32, i32) {
    %c0_i32 = arith.constant 0 : i32
    %c0_i32_0 = arith.constant 0 : i32
    %c0_i32_1 = arith.constant 0 : i32
    return %c0_i32, %c0_i32_0 : i32, i32
  }
  func.func @transform_5(%arg0: i32) -> (i32, i32) {
    %c0_i32 = arith.constant 0 : i32
    %c0_i32_0 = arith.constant 0 : i32
    return %c0_i32, %arg0 : i32, i32
  }
}

</mosaic_0001>

<llo_original>
// kernel: neg.1
$region0: #{neg.1}
  #allocation0 [shape = 's32[1]{0}', space=sflag, size = 0x4, scoped, tag = 'scoped memory for neg.1']
  %s0 = inlined_call_operand.<no memory space> [shape: s32[], index: 0, kind: input, shape index: {}]
  %s1 = inlined_call_operand.vmem [shape: s32[2,8,8,8], index: 1, kind: output, shape index: {}]
  %v2 = vstv %s0
  %3 = vst [vmem:[%s1] sm:$0xff] %v2
  %s4 = scalar_lea.vmem %s1, 64
  %5 = vst [vmem:[%s4] sm:$0xff] %v2
  %s6 = scalar_lea.vmem %s1, 8
  %7 = vst [vmem:[%s6] sm:$0xff] %v2
  %s8 = scalar_lea.vmem %s1, 72
  %9 = vst [vmem:[%s8] sm:$0xff] %v2
  %s10 = scalar_lea.vmem %s1, 16
  %11 = vst [vmem:[%s10] sm:$0xff] %v2
  %s12 = scalar_lea.vmem %s1, 80
  %13 = vst [vmem:[%s12] sm:$0xff] %v2
  %s14 = scalar_lea.vmem %s1, 24
  %15 = vst [vmem:[%s14] sm:$0xff] %v2
  %s16 = scalar_lea.vmem %s1, 88
  %17 = vst [vmem:[%s16] sm:$0xff] %v2
  %s18 = scalar_lea.vmem %s1, 32
  %19 = vst [vmem:[%s18] sm:$0xff] %v2
  %s20 = scalar_lea.vmem %s1, 96
  %21 = vst [vmem:[%s20] sm:$0xff] %v2
  %s22 = scalar_lea.vmem %s1, 40
  %23 = vst [vmem:[%s22] sm:$0xff] %v2
  %s24 = scalar_lea.vmem %s1, 104
  %25 = vst [vmem:[%s24] sm:$0xff] %v2
  %s26 = scalar_lea.vmem %s1, 48
  %27 = vst [vmem:[%s26] sm:$0xff] %v2
  %s28 = scalar_lea.vmem %s1, 112
  %29 = vst [vmem:[%s28] sm:$0xff] %v2
  %s30 = scalar_lea.vmem %s1, 56
  %31 = vst [vmem:[%s30] sm:$0xff] %v2
  %s32 = scalar_lea.vmem %s1, 120
  %33 = vst [vmem:[%s32] sm:$0xff] %v2

// kernel: _lambda_.1
$region0: #{_lambda_.1}
  #allocation0 [shape = 'u32[]', space=smem, size = 0x4, offset = 0x4, fixed_abs, tag = 'smem constant byte address 0x4 - core index']
  #allocation1 [shape = 'u32[144,128]{1,0:T(1,128)}', space=vmem, size = 0x12000, scoped, tag = 'internal scratch']
  %s0 = inlined_call_operand.vmem [shape: bf16[896,128], index: 0, kind: input, shape index: {}]
  %s1 = inlined_call_operand.vmem [shape: bf16[32,896], index: 1, kind: input, shape index: {}]
  %s2 = inlined_call_operand.vmem [shape: f32[32,1], index: 2, kind: input, shape index: {}]
  %s3 = inlined_call_operand.vmem [shape: f32[32,1], index: 3, kind: input, shape index: {}]
  %s4 = inlined_call_operand.vmem [shape: f32[32,1], index: 4, kind: input, shape index: {}]
  %s5 = inlined_call_operand.vmem [shape: f32[32,128], index: 5, kind: output, shape index: {}]
  %s6 = sld [smem:[#allocation0]]
  $region30: #{_lambda_.1} parent=0
    _
  %s8 = ssub.s32 1, %s6
  %s9 = scalar_select 0, %s8, %s6
  // Predicated region
  $region2: #{_lambda_.1} parent=0 // pred_check
    _
  $region3: #{_lambda_.1} parent=0 // pred_check_branch
    %11 = sbr.rel (0) target = $region5
  $region4: #{_lambda_.1} parent=0 // pred_region
    _
  $region5: #{_lambda_.1} parent=0 // pred_fallthru
    _
  // Predicated region
  $region6: #{_lambda_.1} parent=0 // pred_check
    _
  $region7: #{_lambda_.1} parent=0 // pred_check_branch
    %13 = sbr.rel (0) target = $region9
  $region8: #{_lambda_.1} parent=0 // pred_region
    _
  $region9: #{_lambda_.1} parent=0 // pred_fallthru
    _
  // Predicated region
  $region10: #{_lambda_.1} parent=0 // pred_check
    _
  $region11: #{_lambda_.1} parent=0 // pred_check_branch
    %15 = sbr.rel (0) target = $region13
  $region12: #{_lambda_.1} parent=0 // pred_region
    _
  $region13: #{_lambda_.1} parent=0 // pred_fallthru
    _
  // Predicated region
  $region14: #{_lambda_.1} parent=0 // pred_check
    _
  $region15: #{_lambda_.1} parent=0 // pred_check_branch
    %17 = sbr.rel (0) target = $region17
  $region16: #{_lambda_.1} parent=0 // pred_region
    _
  $region17: #{_lambda_.1} parent=0 // pred_fallthru
    _
  // Predicated region
  $region18: #{_lambda_.1} parent=0 // pred_check
    _
  $region19: #{_lambda_.1} parent=0 // pred_check_branch
    %19 = sbr.rel (0) target = $region21
  $region20: #{_lambda_.1} parent=0 // pred_region
    _
  $region21: #{_lambda_.1} parent=0 // pred_fallthru
    _
  %v21 = vld [vmem:[%s1] sm:$0xff]
  %v22 = vld [vmem:[%s1 + $0x8] sm:$0xff]
  %v23 = vld [vmem:[%s1 + $0x10] sm:$0xff]
  %v24 = vld [vmem:[%s1 + $0x18] sm:$0xf]
  %v25 = vld [vmem:[%s1 + $0x1c] sm:$0xff]
  %v26 = vld [vmem:[%s1 + $0x24] sm:$0xff]
  %v27 = vld [vmem:[%s1 + $0x2c] sm:$0xff]
  %v28 = vld [vmem:[%s1 + $0x34] sm:$0xf]
  %v29 = vld [vmem:[%s1 + $0x38] sm:$0xff]
  %v30 = vld [vmem:[%s1 + $0x40] sm:$0xff]
  %v31 = vld [vmem:[%s1 + $0x48] sm:$0xff]
  %v32 = vld [vmem:[%s1 + $0x50] sm:$0xf]
  %v33 = vld [vmem:[%s1 + $0x54] sm:$0xff]
  %v34 = vld [vmem:[%s1 + $0x5c] sm:$0xff]
  %v35 = vld [vmem:[%s1 + $0x64] sm:$0xff]
  %v36 = vld [vmem:[%s1 + $0x6c] sm:$0xf]
  %v37 = vld [vmem:[%s0] sm:$0xf]
  %v38 = vld [vmem:[%s0 + $0x4] sm:$0xf]
  %v39 = vld [vmem:[%s0 + $0x8] sm:$0xf]
  %v40 = vld [vmem:[%s0 + $0xc] sm:$0xf]
  %v41 = vld [vmem:[%s0 + $0x10] sm:$0xf]
  %v42 = vld [vmem:[%s0 + $0x14] sm:$0xf]
  %v43 = vld [vmem:[%s0 + $0x18] sm:$0xf]
  %v44 = vld [vmem:[%s0 + $0x1c] sm:$0xf]
  %v45 = vld [vmem:[%s0 + $0x20] sm:$0xf]
  %v46 = vld [vmem:[%s0 + $0x24] sm:$0xf]
  %v47 = vld [vmem:[%s0 + $0x28] sm:$0xf]
  %v48 = vld [vmem:[%s0 + $0x2c] sm:$0xf]
  %v49 = vld [vmem:[%s0 + $0x30] sm:$0xf]
  %v50 = vld [vmem:[%s0 + $0x34] sm:$0xf]
  %v51 = vld [vmem:[%s0 + $0x38] sm:$0xf]
  %v52 = vld [vmem:[%s0 + $0x3c] sm:$0xf]
  %v53 = vld [vmem:[%s0 + $0x40] sm:$0xf]
  %v54 = vld [vmem:[%s0 + $0x44] sm:$0xf]
  %v55 = vld [vmem:[%s0 + $0x48] sm:$0xf]
  %v56 = vld [vmem:[%s0 + $0x4c] sm:$0xf]
  %v57 = vld [vmem:[%s0 + $0x50] sm:$0xf]
  %v58 = vld [vmem:[%s0 + $0x54] sm:$0xf]
  %v59 = vld [vmem:[%s0 + $0x58] sm:$0xf]
  %v60 = vld [vmem:[%s0 + $0x5c] sm:$0xf]
  %v61 = vld [vmem:[%s0 + $0x60] sm:$0xf]
  %v62 = vld [vmem:[%s0 + $0x64] sm:$0xf]
  %v63 = vld [vmem:[%s0 + $0x68] sm:$0xf]
  %v64 = vld [vmem:[%s0 + $0x6c] sm:$0xf]
  %v65 = vld [vmem:[%s0 + $0x70] sm:$0xf]
  %v66 = vld [vmem:[%s0 + $0x74] sm:$0xf]
  %v67 = vld [vmem:[%s0 + $0x78] sm:$0xf]
  %v68 = vld [vmem:[%s0 + $0x7c] sm:$0xf]
  %v69 = vld [vmem:[%s0 + $0x80] sm:$0xf]
  %v70 = vld [vmem:[%s0 + $0x84] sm:$0xf]
  %v71 = vld [vmem:[%s0 + $0x88] sm:$0xf]
  %v72 = vld [vmem:[%s0 + $0x8c] sm:$0xf]
  %v73 = vld [vmem:[%s0 + $0x90] sm:$0xf]
  %v74 = vld [vmem:[%s0 + $0x94] sm:$0xf]
  %v75 = vld [vmem:[%s0 + $0x98] sm:$0xf]
  %v76 = vld [vmem:[%s0 + $0x9c] sm:$0xf]
  %v77 = vld [vmem:[%s0 + $0xa0] sm:$0xf]
  %v78 = vld [vmem:[%s0 + $0xa4] sm:$0xf]
  %v79 = vld [vmem:[%s0 + $0xa8] sm:$0xf]
  %v80 = vld [vmem:[%s0 + $0xac] sm:$0xf]
  %v81 = vld [vmem:[%s0 + $0xb0] sm:$0xf]
  %v82 = vld [vmem:[%s0 + $0xb4] sm:$0xf]
  %v83 = vld [vmem:[%s0 + $0xb8] sm:$0xf]
  %v84 = vld [vmem:[%s0 + $0xbc] sm:$0xf]
  %v85 = vld [vmem:[%s0 + $0xc0] sm:$0xf]
  %v86 = vld [vmem:[%s0 + $0xc4] sm:$0xf]
  %v87 = vld [vmem:[%s0 + $0xc8] sm:$0xf]
  %v88 = vld [vmem:[%s0 + $0xcc] sm:$0xf]
  %v89 = vld [vmem:[%s0 + $0xd0] sm:$0xf]
  %v90 = vld [vmem:[%s0 + $0xd4] sm:$0xf]
  %v91 = vld [vmem:[%s0 + $0xd8] sm:$0xf]
  %v92 = vld [vmem:[%s0 + $0xdc] sm:$0xf]
  %v93 = vld [vmem:[%s0 + $0xe0] sm:$0xf]
  %v94 = vld [vmem:[%s0 + $0xe4] sm:$0xf]
  %v95 = vld [vmem:[%s0 + $0xe8] sm:$0xf]
  %v96 = vld [vmem:[%s0 + $0xec] sm:$0xf]
  %v97 = vld [vmem:[%s0 + $0xf0] sm:$0xf]
  %v98 = vld [vmem:[%s0 + $0xf4] sm:$0xf]
  %v99 = vld [vmem:[%s0 + $0xf8] sm:$0xf]
  %v100 = vld [vmem:[%s0 + $0xfc] sm:$0xf]
  %v101 = vld [vmem:[%s0 + $0x100] sm:$0xf]
  %v102 = vld [vmem:[%s0 + $0x104] sm:$0xf]
  %v103 = vld [vmem:[%s0 + $0x108] sm:$0xf]
  %v104 = vld [vmem:[%s0 + $0x10c] sm:$0xf]
  %v105 = vld [vmem:[%s0 + $0x110] sm:$0xf]
  %v106 = vld [vmem:[%s0 + $0x114] sm:$0xf]
  %v107 = vld [vmem:[%s0 + $0x118] sm:$0xf]
  %v108 = vld [vmem:[%s0 + $0x11c] sm:$0xf]
  %v109 = vld [vmem:[%s0 + $0x120] sm:$0xf]
  %v110 = vld [vmem:[%s0 + $0x124] sm:$0xf]
  %v111 = vld [vmem:[%s0 + $0x128] sm:$0xf]
  %v112 = vld [vmem:[%s0 + $0x12c] sm:$0xf]
  %v113 = vld [vmem:[%s0 + $0x130] sm:$0xf]
  %v114 = vld [vmem:[%s0 + $0x134] sm:$0xf]
  %v115 = vld [vmem:[%s0 + $0x138] sm:$0xf]
  %v116 = vld [vmem:[%s0 + $0x13c] sm:$0xf]
  %v117 = vld [vmem:[%s0 + $0x140] sm:$0xf]
  %v118 = vld [vmem:[%s0 + $0x144] sm:$0xf]
  %v119 = vld [vmem:[%s0 + $0x148] sm:$0xf]
  %v120 = vld [vmem:[%s0 + $0x14c] sm:$0xf]
  %v121 = vld [vmem:[%s0 + $0x150] sm:$0xf]
  %v122 = vld [vmem:[%s0 + $0x154] sm:$0xf]
  %v123 = vld [vmem:[%s0 + $0x158] sm:$0xf]
  %v124 = vld [vmem:[%s0 + $0x15c] sm:$0xf]
  %v125 = vld [vmem:[%s0 + $0x160] sm:$0xf]
  %v126 = vld [vmem:[%s0 + $0x164] sm:$0xf]
  %v127 = vld [vmem:[%s0 + $0x168] sm:$0xf]
  %v128 = vld [vmem:[%s0 + $0x16c] sm:$0xf]
  %v129 = vld [vmem:[%s0 + $0x170] sm:$0xf]
  %v130 = vld [vmem:[%s0 + $0x174] sm:$0xf]
  %v131 = vld [vmem:[%s0 + $0x178] sm:$0xf]
  %v132 = vld [vmem:[%s0 + $0x17c] sm:$0xf]
  %v133 = vld [vmem:[%s0 + $0x180] sm:$0xf]
  %v134 = vld [vmem:[%s0 + $0x184] sm:$0xf]
  %v135 = vld [vmem:[%s0 + $0x188] sm:$0xf]
  %v136 = vld [vmem:[%s0 + $0x18c] sm:$0xf]
  %v137 = vld [vmem:[%s0 + $0x190] sm:$0xf]
  %v138 = vld [vmem:[%s0 + $0x194] sm:$0xf]
  %v139 = vld [vmem:[%s0 + $0x198] sm:$0xf]
  %v140 = vld [vmem:[%s0 + $0x19c] sm:$0xf]
  %v141 = vld [vmem:[%s0 + $0x1a0] sm:$0xf]
  %v142 = vld [vmem:[%s0 + $0x1a4] sm:$0xf]
  %v143 = vld [vmem:[%s0 + $0x1a8] sm:$0xf]
  %v144 = vld [vmem:[%s0 + $0x1ac] sm:$0xf]
  %v145 = vld [vmem:[%s0 + $0x1b0] sm:$0xf]
  %v146 = vld [vmem:[%s0 + $0x1b4] sm:$0xf]
  %v147 = vld [vmem:[%s0 + $0x1b8] sm:$0xf]
  %v148 = vld [vmem:[%s0 + $0x1bc] sm:$0xf]
  %v149 = vld [vmem:[%s2] sm:$0xff]
  %v150 = vld [vmem:[%s2 + $0x8] sm:$0xff]
  %v151 = vld [vmem:[%s2 + $0x10] sm:$0xff]
  %v152 = vld [vmem:[%s2 + $0x18] sm:$0xff]
  %154 = vset.pattern.permute.xlu0 0
  %155 = vperm.xlu0 %154, %v149
  %v156 = vpop.permute.xlu0 %155
  %159 = vset.pattern.permute.xlu0 0
  %160 = vperm.xlu0 %159, %v150
  %v161 = vpop.permute.xlu0 %160
  %164 = vset.pattern.permute.xlu0 0
  %165 = vperm.xlu0 %164, %v151
  %v166 = vpop.permute.xlu0 %165
  %169 = vset.pattern.permute.xlu0 0
  %170 = vperm.xlu0 %169, %v152
  %v171 = vpop.permute.xlu0 %170
  %v189 = vunpack.c.l.b16 %v21
  %v190 = vunpack.c.h.b16 %v21
  %v191 = vunpack.c.l.b16 %v22
  %v192 = vunpack.c.h.b16 %v22
  %v193 = vunpack.c.l.b16 %v23
  %v194 = vunpack.c.h.b16 %v23
  %v195 = vunpack.c.l.b16 %v24
  %v196 = vunpack.c.l.b16 %v25
  %v197 = vunpack.c.h.b16 %v25
  %v198 = vunpack.c.l.b16 %v26
  %v199 = vunpack.c.h.b16 %v26
  %v200 = vunpack.c.l.b16 %v27
  %v201 = vunpack.c.h.b16 %v27
  %v202 = vunpack.c.l.b16 %v28
  %v203 = vunpack.c.l.b16 %v29
  %v204 = vunpack.c.h.b16 %v29
  %v205 = vunpack.c.l.b16 %v30
  %v206 = vunpack.c.h.b16 %v30
  %v207 = vunpack.c.l.b16 %v31
  %v208 = vunpack.c.h.b16 %v31
  %v209 = vunpack.c.l.b16 %v32
  %v210 = vunpack.c.l.b16 %v33
  %v211 = vunpack.c.h.b16 %v33
  %v212 = vunpack.c.l.b16 %v34
  %v213 = vunpack.c.h.b16 %v34
  %v214 = vunpack.c.l.b16 %v35
  %v215 = vunpack.c.h.b16 %v35
  %v216 = vunpack.c.l.b16 %v36
  %v217 = vpack.c.b16 %v196, %v189
  %v218 = vpack.c.b16 %v197, %v190
  %v219 = vpack.c.b16 %v198, %v191
  %v220 = vpack.c.b16 %v199, %v192
  %v221 = vpack.c.b16 %v200, %v193
  %v222 = vpack.c.b16 %v201, %v194
  %v223 = vpack.c.b16 %v202, %v195
  %v224 = vpack.c.b16 %v210, %v203
  %v225 = vpack.c.b16 %v211, %v204
  %v226 = vpack.c.b16 %v212, %v205
  %v227 = vpack.c.b16 %v213, %v206
  %v228 = vpack.c.b16 %v214, %v207
  %v229 = vpack.c.b16 %v215, %v208
  %v230 = vpack.c.b16 %v216, %v209
  %v357 = vunpack.c.l.b16 %v37
  %v358 = vunpack.c.l.b16 %v38
  %v359 = vunpack.c.l.b16 %v39
  %v360 = vunpack.c.l.b16 %v40
  %v361 = vunpack.c.l.b16 %v41
  %v362 = vunpack.c.l.b16 %v42
  %v363 = vunpack.c.l.b16 %v43
  %v364 = vunpack.c.l.b16 %v44
  %v365 = vunpack.c.l.b16 %v45
  %v366 = vunpack.c.l.b16 %v46
  %v367 = vunpack.c.l.b16 %v47
  %v368 = vunpack.c.l.b16 %v48
  %v369 = vunpack.c.l.b16 %v49
  %v370 = vunpack.c.l.b16 %v50
  %v371 = vunpack.c.l.b16 %v51
  %v372 = vunpack.c.l.b16 %v52
  %v373 = vunpack.c.l.b16 %v53
  %v374 = vunpack.c.l.b16 %v54
  %v375 = vunpack.c.l.b16 %v55
  %v376 = vunpack.c.l.b16 %v56
  %v377 = vunpack.c.l.b16 %v57
  %v378 = vunpack.c.l.b16 %v58
  %v379 = vunpack.c.l.b16 %v59
  %v380 = vunpack.c.l.b16 %v60
  %v381 = vunpack.c.l.b16 %v61
  %v382 = vunpack.c.l.b16 %v62
  %v383 = vunpack.c.l.b16 %v63
  %v384 = vunpack.c.l.b16 %v64
  %v385 = vunpack.c.l.b16 %v65
  %v386 = vunpack.c.l.b16 %v66
  %v387 = vunpack.c.l.b16 %v67
  %v388 = vunpack.c.l.b16 %v68
  %v389 = vunpack.c.l.b16 %v69
  %v390 = vunpack.c.l.b16 %v70
  %v391 = vunpack.c.l.b16 %v71
  %v392 = vunpack.c.l.b16 %v72
  %v393 = vunpack.c.l.b16 %v73
  %v394 = vunpack.c.l.b16 %v74
  %v395 = vunpack.c.l.b16 %v75
  %v396 = vunpack.c.l.b16 %v76
  %v397 = vunpack.c.l.b16 %v77
  %v398 = vunpack.c.l.b16 %v78
  %v399 = vunpack.c.l.b16 %v79
  %v400 = vunpack.c.l.b16 %v80
  %v401 = vunpack.c.l.b16 %v81
  %v402 = vunpack.c.l.b16 %v82
  %v403 = vunpack.c.l.b16 %v83
  %v404 = vunpack.c.l.b16 %v84
  %v405 = vunpack.c.l.b16 %v85
  %v406 = vunpack.c.l.b16 %v86
  %v407 = vunpack.c.l.b16 %v87
  %v408 = vunpack.c.l.b16 %v88
  %v409 = vunpack.c.l.b16 %v89
  %v410 = vunpack.c.l.b16 %v90
  %v411 = vunpack.c.l.b16 %v91
  %v412 = vunpack.c.l.b16 %v92
  %v413 = vunpack.c.l.b16 %v93
  %v414 = vunpack.c.l.b16 %v94
  %v415 = vunpack.c.l.b16 %v95
  %v416 = vunpack.c.l.b16 %v96
  %v417 = vunpack.c.l.b16 %v97
  %v418 = vunpack.c.l.b16 %v98
  %v419 = vunpack.c.l.b16 %v99
  %v420 = vunpack.c.l.b16 %v100
  %v421 = vunpack.c.l.b16 %v101
  %v422 = vunpack.c.l.b16 %v102
  %v423 = vunpack.c.l.b16 %v103
  %v424 = vunpack.c.l.b16 %v104
  %v425 = vunpack.c.l.b16 %v105
  %v426 = vunpack.c.l.b16 %v106
  %v427 = vunpack.c.l.b16 %v107
  %v428 = vunpack.c.l.b16 %v108
  %v429 = vunpack.c.l.b16 %v109
  %v430 = vunpack.c.l.b16 %v110
  %v431 = vunpack.c.l.b16 %v111
  %v432 = vunpack.c.l.b16 %v112
  %v433 = vunpack.c.l.b16 %v113
  %v434 = vunpack.c.l.b16 %v114
  %v435 = vunpack.c.l.b16 %v115
  %v436 = vunpack.c.l.b16 %v116
  %v437 = vunpack.c.l.b16 %v117
  %v438 = vunpack.c.l.b16 %v118
  %v439 = vunpack.c.l.b16 %v119
  %v440 = vunpack.c.l.b16 %v120
  %v441 = vunpack.c.l.b16 %v121
  %v442 = vunpack.c.l.b16 %v122
  %v443 = vunpack.c.l.b16 %v123
  %v444 = vunpack.c.l.b16 %v124
  %v445 = vunpack.c.l.b16 %v125
  %v446 = vunpack.c.l.b16 %v126
  %v447 = vunpack.c.l.b16 %v127
  %v448 = vunpack.c.l.b16 %v128
  %v449 = vunpack.c.l.b16 %v129
  %v450 = vunpack.c.l.b16 %v130
  %v451 = vunpack.c.l.b16 %v131
  %v452 = vunpack.c.l.b16 %v132
  %v453 = vunpack.c.l.b16 %v133
  %v454 = vunpack.c.l.b16 %v134
  %v455 = vunpack.c.l.b16 %v135
  %v456 = vunpack.c.l.b16 %v136
  %v457 = vunpack.c.l.b16 %v137
  %v458 = vunpack.c.l.b16 %v138
  %v459 = vunpack.c.l.b16 %v139
  %v460 = vunpack.c.l.b16 %v140
  %v461 = vunpack.c.l.b16 %v141
  %v462 = vunpack.c.l.b16 %v142
  %v463 = vunpack.c.l.b16 %v143
  %v464 = vunpack.c.l.b16 %v144
  %v465 = vunpack.c.l.b16 %v145
  %v466 = vunpack.c.l.b16 %v146
  %v467 = vunpack.c.l.b16 %v147
  %v468 = vunpack.c.l.b16 %v148
  %v469 = vpack.c.b16 %v358, %v357
  %v470 = vpack.c.b16 %v360, %v359
  %v471 = vpack.c.b16 %v362, %v361
  %v472 = vpack.c.b16 %v364, %v363
  %v473 = vpack.c.b16 %v366, %v365
  %v474 = vpack.c.b16 %v368, %v367
  %v475 = vpack.c.b16 %v370, %v369
  %v476 = vpack.c.b16 %v372, %v371
  %v477 = vpack.c.b16 %v374, %v373
  %v478 = vpack.c.b16 %v376, %v375
  %v479 = vpack.c.b16 %v378, %v377
  %v480 = vpack.c.b16 %v380, %v379
  %v481 = vpack.c.b16 %v382, %v381
  %v482 = vpack.c.b16 %v384, %v383
  %v483 = vpack.c.b16 %v386, %v385
  %v484 = vpack.c.b16 %v388, %v387
  %v485 = vpack.c.b16 %v390, %v389
  %v486 = vpack.c.b16 %v392, %v391
  %v487 = vpack.c.b16 %v394, %v393
  %v488 = vpack.c.b16 %v396, %v395
  %v489 = vpack.c.b16 %v398, %v397
  %v490 = vpack.c.b16 %v400, %v399
  %v491 = vpack.c.b16 %v402, %v401
  %v492 = vpack.c.b16 %v404, %v403
  %v493 = vpack.c.b16 %v406, %v405
  %v494 = vpack.c.b16 %v408, %v407
  %v495 = vpack.c.b16 %v410, %v409
  %v496 = vpack.c.b16 %v412, %v411
  %v497 = vpack.c.b16 %v414, %v413
  %v498 = vpack.c.b16 %v416, %v415
  %v499 = vpack.c.b16 %v418, %v417
  %v500 = vpack.c.b16 %v420, %v419
  %v501 = vpack.c.b16 %v422, %v421
  %v502 = vpack.c.b16 %v424, %v423
  %v503 = vpack.c.b16 %v426, %v425
  %v504 = vpack.c.b16 %v428, %v427
  %v505 = vpack.c.b16 %v430, %v429
  %v506 = vpack.c.b16 %v432, %v431
  %v507 = vpack.c.b16 %v434, %v433
  %v508 = vpack.c.b16 %v436, %v435
  %v509 = vpack.c.b16 %v438, %v437
  %v510 = vpack.c.b16 %v440, %v439
  %v511 = vpack.c.b16 %v442, %v441
  %v512 = vpack.c.b16 %v444, %v443
  %v513 = vpack.c.b16 %v446, %v445
  %v514 = vpack.c.b16 %v448, %v447
  %v515 = vpack.c.b16 %v450, %v449
  %v516 = vpack.c.b16 %v452, %v451
  %v517 = vpack.c.b16 %v454, %v453
  %v518 = vpack.c.b16 %v456, %v455
  %v519 = vpack.c.b16 %v458, %v457
  %v520 = vpack.c.b16 %v460, %v459
  %v521 = vpack.c.b16 %v462, %v461
  %v522 = vpack.c.b16 %v464, %v463
  %v523 = vpack.c.b16 %v466, %v465
  %v524 = vpack.c.b16 %v468, %v467
  %581 = vmatprep.subr.bf16.mxu0 0
  %582 = vmatpush1.bf16.msra.mxu0 %v469
  %583 = vmatprep.subr.bf16.mxu0 0
  %584 = vmatpush1.bf16.msra.mxu0 %v470
  %585 = vmatprep.subr.bf16.mxu0 0
  %586 = vmatpush1.bf16.msra.mxu0 %v471
  %587 = vmatprep.subr.bf16.mxu0 0
  %588 = vmatpush1.bf16.msra.mxu0 %v472
  %589 = vmatprep.subr.bf16.mxu0 0
  %590 = vmatpush1.bf16.msra.mxu0 %v473
  %591 = vmatprep.subr.bf16.mxu0 0
  %592 = vmatpush1.bf16.msra.mxu0 %v474
  %593 = vmatprep.subr.bf16.mxu0 0
  %594 = vmatpush1.bf16.msra.mxu0 %v475
  %595 = vmatprep.subr.bf16.mxu0 0
  %596 = vmatpush1.bf16.msra.mxu0 %v476
  %597 = vmatprep.subr.bf16.mxu0 0
  %598 = vmatpush1.bf16.msra.mxu0 %v477
  %599 = vmatprep.subr.bf16.mxu0 0
  %600 = vmatpush1.bf16.msra.mxu0 %v478
  %601 = vmatprep.subr.bf16.mxu0 0
  %602 = vmatpush1.bf16.msra.mxu0 %v479
  %603 = vmatprep.subr.bf16.mxu0 0
  %604 = vmatpush1.bf16.msra.mxu0 %v480
  %605 = vmatprep.subr.bf16.mxu0 0
  %606 = vmatpush1.bf16.msra.mxu0 %v481
  %607 = vmatprep.subr.bf16.mxu0 0
  %608 = vmatpush1.bf16.msra.mxu0 %v482
  %609 = vmatprep.subr.bf16.mxu0 0
  %610 = vmatpush1.bf16.msra.mxu0 %v483
  %611 = vmatprep.subr.bf16.mxu0 0
  %612 = vmatpush1.bf16.msra.mxu0 %v484
  %613 = vmatprep.mubr.bf16.mxu0 %v218
  %614 = vmatmul.mubr.bf16.gmra.mrb[0].mxu0 %v217
  %v615 = vpop.f32.mrb[0].mxu0
  %v616 = vadd.f32 %v156, %v615
  %v617 = vpop.f32.mrb[0].mxu0
  %v618 = vpop.f32.mrb[0].mxu0
  %v619 = vadd.f32 %v161, %v618
  %v620 = vpop.f32.mrb[0].mxu0
  %621 = vmatprep.mubr.bf16.mxu0 %v225
  %622 = vmatmul.mubr.bf16.gmra.mrb[0].mxu0 %v224
  %v623 = vpop.f32.mrb[0].mxu0
  %v624 = vadd.f32 %v166, %v623
  %v625 = vpop.f32.mrb[0].mxu0
  %v626 = vpop.f32.mrb[0].mxu0
  %v627 = vadd.f32 %v171, %v626
  %v628 = vpop.f32.mrb[0].mxu0
  %629 = vdwg.mxu0
  %630 = vmatprep.subr.bf16.mxu0 0
  %631 = vmatpush1.bf16.msra.mxu0 %v485
  %632 = vmatprep.subr.bf16.mxu0 0
  %633 = vmatpush1.bf16.msra.mxu0 %v486
  %634 = vmatprep.subr.bf16.mxu0 0
  %635 = vmatpush1.bf16.msra.mxu0 %v487
  %636 = vmatprep.subr.bf16.mxu0 0
  %637 = vmatpush1.bf16.msra.mxu0 %v488
  %638 = vmatprep.subr.bf16.mxu0 0
  %639 = vmatpush1.bf16.msra.mxu0 %v489
  %640 = vmatprep.subr.bf16.mxu0 0
  %641 = vmatpush1.bf16.msra.mxu0 %v490
  %642 = vmatprep.subr.bf16.mxu0 0
  %643 = vmatpush1.bf16.msra.mxu0 %v491
  %644 = vmatprep.subr.bf16.mxu0 0
  %645 = vmatpush1.bf16.msra.mxu0 %v492
  %646 = vmatprep.subr.bf16.mxu0 0
  %647 = vmatpush1.bf16.msra.mxu0 %v493
  %648 = vmatprep.subr.bf16.mxu0 0
  %649 = vmatpush1.bf16.msra.mxu0 %v494
  %650 = vmatprep.subr.bf16.mxu0 0
  %651 = vmatpush1.bf16.msra.mxu0 %v495
  %652 = vmatprep.subr.bf16.mxu0 0
  %653 = vmatpush1.bf16.msra.mxu0 %v496
  %654 = vmatprep.subr.bf16.mxu0 0
  %655 = vmatpush1.bf16.msra.mxu0 %v497
  %656 = vmatprep.subr.bf16.mxu0 0
  %657 = vmatpush1.bf16.msra.mxu0 %v498
  %658 = vmatprep.subr.bf16.mxu0 0
  %659 = vmatpush1.bf16.msra.mxu0 %v499
  %660 = vmatprep.subr.bf16.mxu0 0
  %661 = vmatpush1.bf16.msra.mxu0 %v500
  %662 = vmatprep.mubr.bf16.mxu0 %v220
  %663 = vmatmul.mubr.bf16.gmra.mrb[0].mxu0 %v219
  %v664 = vpop.f32.mrb[0].mxu0
  %v665 = vadd.f32 %v616, %v664
  %v666 = vpop.f32.mrb[0].mxu0
  %v667 = vpop.f32.mrb[0].mxu0
  %v668 = vadd.f32 %v619, %v667
  %v669 = vpop.f32.mrb[0].mxu0
  %670 = vmatprep.mubr.bf16.mxu0 %v227
  %671 = vmatmul.mubr.bf16.gmra.mrb[0].mxu0 %v226
  %v672 = vpop.f32.mrb[0].mxu0
  %v673 = vadd.f32 %v624, %v672
  %v674 = vpop.f32.mrb[0].mxu0
  %v675 = vpop.f32.mrb[0].mxu0
  %v676 = vadd.f32 %v627, %v675
  %v677 = vpop.f32.mrb[0].mxu0
  %678 = vdwg.mxu0
  %679 = vmatprep.subr.bf16.mxu0 0
  %680 = vmatpush1.bf16.msra.mxu0 %v501
  %681 = vmatprep.subr.bf16.mxu0 0
  %682 = vmatpush1.bf16.msra.mxu0 %v502
  %683 = vmatprep.subr.bf16.mxu0 0
  %684 = vmatpush1.bf16.msra.mxu0 %v503
  %685 = vmatprep.subr.bf16.mxu0 0
  %686 = vmatpush1.bf16.msra.mxu0 %v504
  %687 = vmatprep.subr.bf16.mxu0 0
  %688 = vmatpush1.bf16.msra.mxu0 %v505
  %689 = vmatprep.subr.bf16.mxu0 0
  %690 = vmatpush1.bf16.msra.mxu0 %v506
  %691 = vmatprep.subr.bf16.mxu0 0
  %692 = vmatpush1.bf16.msra.mxu0 %v507
  %693 = vmatprep.subr.bf16.mxu0 0
  %694 = vmatpush1.bf16.msra.mxu0 %v508
  %695 = vmatprep.subr.bf16.mxu0 0
  %696 = vmatpush1.bf16.msra.mxu0 %v509
  %697 = vmatprep.subr.bf16.mxu0 0
  %698 = vmatpush1.bf16.msra.mxu0 %v510
  %699 = vmatprep.subr.bf16.mxu0 0
  %700 = vmatpush1.bf16.msra.mxu0 %v511
  %701 = vmatprep.subr.bf16.mxu0 0
  %702 = vmatpush1.bf16.msra.mxu0 %v512
  %703 = vmatprep.subr.bf16.mxu0 0
  %704 = vmatpush1.bf16.msra.mxu0 %v513
  %705 = vmatprep.subr.bf16.mxu0 0
  %706 = vmatpush1.bf16.msra.mxu0 %v514
  %707 = vmatprep.subr.bf16.mxu0 0
  %708 = vmatpush1.bf16.msra.mxu0 %v515
  %709 = vmatprep.subr.bf16.mxu0 0
  %710 = vmatpush1.bf16.msra.mxu0 %v516
  %711 = vmatprep.mubr.bf16.mxu0 %v222
  %712 = vmatmul.mubr.bf16.gmra.mrb[0].mxu0 %v221
  %v713 = vpop.f32.mrb[0].mxu0
  %v714 = vadd.f32 %v665, %v713
  %v715 = vpop.f32.mrb[0].mxu0
  %v716 = vpop.f32.mrb[0].mxu0
  %v717 = vadd.f32 %v668, %v716
  %v718 = vpop.f32.mrb[0].mxu0
  %719 = vmatprep.mubr.bf16.mxu0 %v229
  %720 = vmatmul.mubr.bf16.gmra.mrb[0].mxu0 %v228
  %v721 = vpop.f32.mrb[0].mxu0
  %v722 = vadd.f32 %v673, %v721
  %v723 = vpop.f32.mrb[0].mxu0
  %v724 = vpop.f32.mrb[0].mxu0
  %v725 = vadd.f32 %v676, %v724
  %v726 = vpop.f32.mrb[0].mxu0
  %727 = vdwg.mxu0
  %728 = vmatprep.subr.bf16.mxu0 0
  %729 = vmatpush1.bf16.msra.mxu0 %v517
  %730 = vmatprep.subr.bf16.mxu0 0
  %731 = vmatpush1.bf16.msra.mxu0 %v518
  %732 = vmatprep.subr.bf16.mxu0 0
  %733 = vmatpush1.bf16.msra.mxu0 %v519
  %734 = vmatprep.subr.bf16.mxu0 0
  %735 = vmatpush1.bf16.msra.mxu0 %v520
  %736 = vmatprep.subr.bf16.mxu0 0
  %737 = vmatpush1.bf16.msra.mxu0 %v521
  %738 = vmatprep.subr.bf16.mxu0 0
  %739 = vmatpush1.bf16.msra.mxu0 %v522
  %740 = vmatprep.subr.bf16.mxu0 0
  %741 = vmatpush1.bf16.msra.mxu0 %v523
  %742 = vmatprep.subr.bf16.mxu0 0
  %743 = vmatpush1.bf16.msra.mxu0 %v524
  %744 = vmatprep.subr.bf16.mxu0 0
  %745 = vmatpush1.bf16.msra.mxu0 0
  %746 = vmatprep.subr.bf16.mxu0 0
  %747 = vmatpush1.bf16.msra.mxu0 0
  %748 = vmatprep.subr.bf16.mxu0 0
  %749 = vmatpush1.bf16.msra.mxu0 0
  %750 = vmatprep.subr.bf16.mxu0 0
  %751 = vmatpush1.bf16.msra.mxu0 0
  %752 = vmatprep.subr.bf16.mxu0 0
  %753 = vmatpush1.bf16.msra.mxu0 0
  %754 = vmatprep.subr.bf16.mxu0 0
  %755 = vmatpush1.bf16.msra.mxu0 0
  %756 = vmatprep.subr.bf16.mxu0 0
  %757 = vmatpush1.bf16.msra.mxu0 0
  %758 = vmatprep.subr.bf16.mxu0 0
  %759 = vmatpush1.bf16.msra.mxu0 0
  %760 = vmatprep.mubr.bf16.mxu0 0
  %761 = vmatmul.mubr.bf16.gmra.mrb[0].mxu0 %v223
  %v762 = vpop.f32.mrb[0].mxu0
  %v763 = vadd.f32 %v714, %v762
  %v764 = vpop.f32.mrb[0].mxu0
  %v765 = vpop.f32.mrb[0].mxu0
  %v766 = vadd.f32 %v717, %v765
  %v767 = vpop.f32.mrb[0].mxu0
  %768 = vmatprep.mubr.bf16.mxu0 0
  %769 = vmatmul.mubr.bf16.gmra.mrb[0].mxu0 %v230
  %v770 = vpop.f32.mrb[0].mxu0
  %v771 = vadd.f32 %v722, %v770
  %v772 = vpop.f32.mrb[0].mxu0
  %v773 = vpop.f32.mrb[0].mxu0
  %v774 = vadd.f32 %v725, %v773
  %v775 = vpop.f32.mrb[0].mxu0
  %776 = vdwg.mxu0
  %v777 = vmul.f32 %v763, 0.5
  %v778 = vmul.f32 %v766, 0.5
  %v779 = vmul.f32 %v771, 0.5
  %v780 = vmul.f32 %v774, 0.5
  %v781 = vmul.f32 %v763, 0.70710677
  %v782 = vmul.f32 %v766, 0.70710677
  %v783 = vmul.f32 %v771, 0.70710677
  %v784 = vmul.f32 %v774, 0.70710677
  %v785 = verf.f32.pop %v781
  %v786 = verf.f32.pop %v782
  %v787 = verf.f32.pop %v783
  %v788 = verf.f32.pop %v784
  %v789 = vadd.f32 %v785, 1.0
  %v790 = vadd.f32 %v786, 1.0
  %v791 = vadd.f32 %v787, 1.0
  %v792 = vadd.f32 %v788, 1.0
  %v793 = vmul.f32 %v777, %v789
  %v794 = vmul.f32 %v778, %v790
  %v795 = vmul.f32 %v779, %v791
  %v796 = vmul.f32 %v780, %v792
  %v797 = vadd.f32 %v793, %v794
  %v798 = vadd.f32 %v797, %v795
  %v799 = vadd.f32 %v798, %v796
  %v800 = vrot.slane %v799, 4
  %v801 = vadd.f32 %v799, %v800
  %v802 = vrot.slane %v801, 2
  %v803 = vadd.f32 %v801, %v802
  %v804 = vrot.slane %v803, 1
  %v805 = vadd.f32 %v803, %v804
  %v806 = vrcp.pop 32.0
  %v807 = vmul.f32 %v805, %v806
  %v808 = vsub.f32 %v793, %v807
  %v809 = vsub.f32 %v794, %v807
  %v810 = vsub.f32 %v795, %v807
  %v811 = vsub.f32 %v796, %v807
  %v812 = vmul.f32 %v808, %v808
  %v813 = vmul.f32 %v809, %v809
  %v814 = vmul.f32 %v810, %v810
  %v815 = vmul.f32 %v811, %v811
  %v816 = vadd.f32 %v812, %v813
  %v817 = vadd.f32 %v816, %v814
  %v818 = vadd.f32 %v817, %v815
  %v819 = vrot.slane %v818, 4
  %v820 = vadd.f32 %v818, %v819
  %v821 = vrot.slane %v820, 2
  %v822 = vadd.f32 %v820, %v821
  %v823 = vrot.slane %v822, 1
  %v824 = vadd.f32 %v822, %v823
  %v825 = vmul.f32 %v824, %v806
  %v826 = vadd.f32 %v825, 1e-05
  %v827 = vrsqrt.pop %v826
  %v828 = vmul.f32 %v808, %v827
  %v829 = vmul.f32 %v809, %v827
  %v830 = vmul.f32 %v810, %v827
  %v831 = vmul.f32 %v811, %v827
  %v832 = vld [vmem:[%s3] sm:$0xff]
  %v833 = vld [vmem:[%s3 + $0x8] sm:$0xff]
  %v834 = vld [vmem:[%s3 + $0x10] sm:$0xff]
  %v835 = vld [vmem:[%s3 + $0x18] sm:$0xff]
  %837 = vset.pattern.permute.xlu0 0
  %838 = vperm.xlu0 %837, %v832
  %v839 = vpop.permute.xlu0 %838
  %842 = vset.pattern.permute.xlu0 0
  %843 = vperm.xlu0 %842, %v833
  %v844 = vpop.permute.xlu0 %843
  %847 = vset.pattern.permute.xlu0 0
  %848 = vperm.xlu0 %847, %v834
  %v849 = vpop.permute.xlu0 %848
  %852 = vset.pattern.permute.xlu0 0
  %853 = vperm.xlu0 %852, %v835
  %v854 = vpop.permute.xlu0 %853
  %v856 = vmul.f32 %v828, %v839
  %v857 = vmul.f32 %v829, %v844
  %v858 = vmul.f32 %v830, %v849
  %v859 = vmul.f32 %v831, %v854
  %v860 = vld [vmem:[%s4] sm:$0xff]
  %v861 = vld [vmem:[%s4 + $0x8] sm:$0xff]
  %v862 = vld [vmem:[%s4 + $0x10] sm:$0xff]
  %v863 = vld [vmem:[%s4 + $0x18] sm:$0xff]
  %865 = vset.pattern.permute.xlu0 0
  %866 = vperm.xlu0 %865, %v860
  %v867 = vpop.permute.xlu0 %866
  %870 = vset.pattern.permute.xlu0 0
  %871 = vperm.xlu0 %870, %v861
  %v872 = vpop.permute.xlu0 %871
  %875 = vset.pattern.permute.xlu0 0
  %876 = vperm.xlu0 %875, %v862
  %v877 = vpop.permute.xlu0 %876
  %880 = vset.pattern.permute.xlu0 0
  %881 = vperm.xlu0 %880, %v863
  %v882 = vpop.permute.xlu0 %881
  %v884 = vadd.f32 %v856, %v867
  %v885 = vadd.f32 %v857, %v872
  %v886 = vadd.f32 %v858, %v877
  %v887 = vadd.f32 %v859, %v882
  %888 = vst [vmem:[%s5] sm:$0xff] %v884
  %889 = vst [vmem:[%s5 + $0x8] sm:$0xff] %v885
  %890 = vst [vmem:[%s5 + $0x10] sm:$0xff] %v886
  %891 = vst [vmem:[%s5 + $0x18] sm:$0xff] %v887
  // Predicated region
  $region22: #{_lambda_.1} parent=0 // pred_check
    _
  $region23: #{_lambda_.1} parent=0 // pred_check_branch
    %893 = sbr.rel (0) target = $region25
  $region24: #{_lambda_.1} parent=0 // pred_region
    _
  $region25: #{_lambda_.1} parent=0 // pred_fallthru
    _
  // Predicated region
  $region26: #{_lambda_.1} parent=0 // pred_check
    _
  $region27: #{_lambda_.1} parent=0 // pred_check_branch
    %895 = sbr.rel (0) target = $region29
  $region28: #{_lambda_.1} parent=0 // pred_region
    _
  $region29: #{_lambda_.1} parent=0 // pred_fallthru
    _

</llo_original>
